<compile_context>
chip_gen: v5e
topology: v5e:2x2
jax: 0.10.0
libtpu: 0.0.40
codegen_flags: <defaults>
</compile_context>

<pallas_src>
import jax
import jax.numpy as jnp
import numpy as np
from jax.experimental import pallas as pl
from jax.experimental.pallas import tpu as pltpu

LANES = 128                               # conv channels padded to a multiple of this (lane-dense)
_BLOCK_BYTE_BUDGET = 2 * 1024 * 1024      # per logical block; x2 double-buffering << every VMEM budget


def _pick_row_tile(total, bytes_per_row, *, min_steps=4, multiple=8, max_rows=4096):
    """Largest multiple-of-`multiple` divisor of `total` within the byte budget, then halved
    (while still a valid divisor) until the grid has >= min_steps steps when possible."""
    if total % multiple != 0:
        return total                       # single full block (block dim == array dim is legal)
    cap = max(multiple, min(max_rows, _BLOCK_BYTE_BUDGET // max(bytes_per_row, 1)))
    tile = multiple
    for t in range(multiple, min(cap, total) + 1, multiple):
        if total % t == 0:
            tile = t
    while total // tile < min_steps and tile % (2 * multiple) == 0 and total % (tile // 2) == 0:
        tile //= 2
    return tile


# ---------------------------------------------------------------------------
# Kernel A: conv as a single K=27*Cin matmul (+bias) + per-tile BN partial stats.
# ---------------------------------------------------------------------------
def _conv_stats_kernel(x_ref, w_ref, b_ref, y_ref, ssum_ref, ssq_ref):
    # x_ref: (TM, 27*Cin) bf16 im2col rows    w_ref: (27*Cin, Cpad) bf16    b_ref: (1, Cpad) f32
    # y_ref: (TM, Cpad) bf16                  ssum/ssq: (1, 1, Cpad) f32 per-tile BN partials
    y = jnp.dot(x_ref[...], w_ref[...], preferred_element_type=jnp.float32) + b_ref[...]
    y_ref[...] = y.astype(y_ref.dtype)
    ssum_ref[0] = jnp.sum(y, axis=0, keepdims=True)
    ssq_ref[0] = jnp.sum(y * y, axis=0, keepdims=True)
    # TODO(synk): E[y^2]-E[y]^2 can cancel for large-|mean| activations; switch to a Welford-style
    # reduction if activations are not near zero-mean.


# ---------------------------------------------------------------------------
# Kernel B: fused BatchNorm affine + ReLU + MaxPool3d(kernel=(1,2,2)).
# ---------------------------------------------------------------------------
def _bn_relu_pool_kernel(y_ref, scale_ref, shift_ref, o_ref):
    # y_ref: (tb, 2, W, Cpad) bf16 (H-pooling pair on axis 1; last two dims are sublane/lane dense)
    # scale_ref / shift_ref: (1, Cpad) f32        o_ref: (tb, W//2, Cpad) f32
    z = y_ref[...].astype(jnp.float32) * scale_ref[...] + shift_ref[...]
    z = jnp.maximum(z, 0.0)
    zh = jnp.maximum(z[:, 0], z[:, 1])                              # H-pair max (outer axis, stride-free)
    tb, Wf, C = zh.shape
    o_ref[...] = jnp.max(zh.reshape(tb, Wf // 2, 2, C), axis=2)     # W-pair max (sublane-pair reduce)


# ---------------------------------------------------------------------------
# Wrapper
# ---------------------------------------------------------------------------
def conv3d_block_forward(x_ncdhw, weight, bias, gamma, beta, eps=1e-5):
    """Forward pass matching PyTorch Conv3DBlock (BatchNorm in training mode)."""
    N, Cin, D, H, W = x_ncdhw.shape
    Cout = weight.shape[0]
    assert weight.shape == (Cout, Cin, 3, 3, 3)
    assert H % 2 == 0 and W % 2 == 0   # TODO(synk): odd H/W (PyTorch floor-division pooling) unhandled
    Ho, Wo = H // 2, W // 2
    Cpad = -(-Cout // LANES) * LANES
    K = 27 * Cin
    M = N * D * H * W

    # ---- HBM prep: 27-tap im2col (channels-last, bf16) so kernel A is a single deep matmul ----
    x = jnp.transpose(x_ncdhw, (0, 2, 3, 4, 1)).astype(jnp.float32)          # N,D,H,W,Cin
    xp = jnp.pad(x, ((0, 0), (1, 1), (1, 1), (1, 1), (0, 0)))
    taps = [xp[:, kd:kd + D, kh:kh + H, kw:kw + W, :]
            for kd in range(3) for kh in range(3) for kw in range(3)]
    xcol = jnp.concatenate(taps, axis=-1).reshape(M, K).astype(jnp.bfloat16)  # (M, 27*Cin)
    w = jnp.transpose(weight, (2, 3, 4, 1, 0)).reshape(K, Cout)               # (kd,kh,kw,Cin) x Cout
    w = jnp.pad(w, ((0, 0), (0, Cpad - Cout))).astype(jnp.bfloat16)
    b = jnp.pad(bias, (0, Cpad - Cout)).reshape(1, Cpad).astype(jnp.float32)

    # ---- Kernel A: conv(+bias) rows + per-tile BN partial stats ----
    tm = _pick_row_tile(M, bytes_per_row=K * 2 + Cpad * 2, multiple=8)
    ga = M // tm
    cost_a = pl.CostEstimate(
        flops=2 * M * K * Cpad, transcendentals=0,
        bytes_accessed=M * K * 2 + K * Cpad * 2 + Cpad * 4 + M * Cpad * 2 + 2 * ga * Cpad * 4)
    y, ssum, ssq = pl.pallas_call(
        _conv_stats_kernel,
        out_shape=(
            jax.ShapeDtypeStruct((M, Cpad), jnp.bfloat16),
            jax.ShapeDtypeStruct((ga, 1, Cpad), jnp.float32),
            jax.ShapeDtypeStruct((ga, 1, Cpad), jnp.float32),
        ),
        grid=(ga,),
        in_specs=[
            pl.BlockSpec((tm, K), lambda i: (i, 0)),
            pl.BlockSpec((K, Cpad), lambda i: (0, 0)),
            pl.BlockSpec((1, Cpad), lambda i: (0, 0)),
        ],
        out_specs=(
            pl.BlockSpec((tm, Cpad), lambda i: (i, 0)),
            pl.BlockSpec((1, 1, Cpad), lambda i: (i, 0, 0)),
            pl.BlockSpec((1, 1, Cpad), lambda i: (i, 0, 0)),
        ),
        compiler_params=pltpu.CompilerParams(dimension_semantics=("parallel",)),
        cost_estimate=cost_a,
    )(xcol, w, b)

    # ---- BN scale/shift from reduced batch statistics (tiny, plain JAX) ----
    mean = jnp.sum(ssum, axis=(0, 1)) / M
    var = jnp.maximum(jnp.sum(ssq, axis=(0, 1)) / M - mean * mean, 0.0)   # biased (train mode)
    inv = jax.lax.rsqrt(var + eps)
    gpad = jnp.pad(gamma, (0, Cpad - Cout))
    bpad = jnp.pad(beta, (0, Cpad - Cout))
    scale = (gpad * inv).reshape(1, Cpad).astype(jnp.float32)
    shift = (bpad - mean * gpad * inv).reshape(1, Cpad).astype(jnp.float32)

    # ---- Kernel B: fused BN + ReLU + MaxPool(1,2,2), row-tiled, lane/sublane-dense blocks ----
    R = N * D * Ho
    y_win = y.reshape(R, 2, W, Cpad)      # free row-major regroup: h -> (ho, hp); W stays dense
    tb = _pick_row_tile(R, bytes_per_row=2 * W * Cpad * 2 + Wo * Cpad * 4, multiple=1)
    gb = R // tb
    cost_b = pl.CostEstimate(
        flops=5 * M * Cpad, transcendentals=0,
        bytes_accessed=M * Cpad * 2 + (M // 4) * Cpad * 4 + 2 * Cpad * 4)
    pooled = pl.pallas_call(
        _bn_relu_pool_kernel,
        out_shape=jax.ShapeDtypeStruct((R, Wo, Cpad), jnp.float32),
        grid=(gb,),
        in_specs=[
            pl.BlockSpec((tb, 2, W, Cpad), lambda i: (i, 0, 0, 0)),
            pl.BlockSpec((1, Cpad), lambda i: (0, 0)),
            pl.BlockSpec((1, Cpad), lambda i: (0, 0)),
        ],
        out_specs=pl.BlockSpec((tb, Wo, Cpad), lambda i: (i, 0, 0)),
        compiler_params=pltpu.CompilerParams(dimension_semantics=("parallel",)),
        cost_estimate=cost_b,
    )(y_win, scale, shift)

    # TODO(synk): for Cout << 128 the Cpad-padded y/pooled streams still carry dead lanes; a
    # channels-on-sublanes layout would remove them but needs lane-axis pooling (XLU shuffles).
    out = pooled.reshape(N, D, Ho, Wo, Cpad)[..., :Cout]   # slice+transpose fuse into one XLA op
    return jnp.transpose(out, (0, 4, 1, 2, 3))             # back to NCDHW


# ---------------------------------------------------------------------------
# Pure-JAX reference (mirrors PyTorch semantics) for the correctness check.
# ---------------------------------------------------------------------------
def reference_forward(x, weight, bias, gamma, beta, eps=1e-5):
    y = jax.lax.conv_general_dilated(
        x, weight, window_strides=(1, 1, 1),
        padding=((1, 1), (1, 1), (1, 1)),
        dimension_numbers=("NCDHW", "OIDHW", "NCDHW"),
        precision=jax.lax.Precision.HIGHEST,
    ) + bias[None, :, None, None, None]
    mean = y.mean(axis=(0, 2, 3, 4), keepdims=True)
    var = y.var(axis=(0, 2, 3, 4), keepdims=True)            # biased, like PyTorch train mode
    y = (y - mean) / jnp.sqrt(var + eps)
    y = y * gamma[None, :, None, None, None] + beta[None, :, None, None, None]
    y = jnp.maximum(y, 0.0)
    N, Cout, D, H, W = y.shape
    return y.reshape(N, Cout, D, H // 2, 2, W // 2, 2).max(axis=(4, 6))


if __name__ == "__main__":
    N, Cin, Cout, D, H, W = 2, 4, 8, 4, 8, 8

    key = jax.random.PRNGKey(0)
    kx, kw, kb, kg, kbt = jax.random.split(key, 5)
    x = jax.random.normal(kx, (N, Cin, D, H, W), dtype=jnp.float32)
    weight = 0.1 * jax.random.normal(kw, (Cout, Cin, 3, 3, 3), dtype=jnp.float32)
    bias = 0.1 * jax.random.normal(kb, (Cout,), dtype=jnp.float32)
    gamma = 1.0 + 0.1 * jax.random.normal(kg, (Cout,), dtype=jnp.float32)
    beta = 0.1 * jax.random.normal(kbt, (Cout,), dtype=jnp.float32)

    out = jax.jit(conv3d_block_forward)(x, weight, bias, gamma, beta)
    out = jax.block_until_ready(out)
    assert out.shape == (N, Cout, D, H // 2, W // 2)

    ref = reference_forward(x, weight, bias, gamma, beta)
    # bf16 MXU operands + bf16 y intermediate => ~1e-2-scale deviations vs the f32/HIGHEST reference.
    np.testing.assert_allclose(np.asarray(out), np.asarray(ref), rtol=2e-2, atol=3e-2)

    print("KERNEL_OK")
</pallas_src>

<mosaic_0001>
module attributes {stable_mosaic.version = 11 : i64} {
  func.func @_conv_stats_kernel(%arg0: i32, %arg1: memref<128x108xbf16, #tpu.memory_space<vmem>>, %arg2: memref<108x128xbf16, #tpu.memory_space<vmem>>, %arg3: memref<1x128xf32, #tpu.memory_space<vmem>>, %arg4: memref<128x128xbf16, #tpu.memory_space<vmem>>, %arg5: memref<1x1x128xf32, #tpu.memory_space<vmem>>, %arg6: memref<1x1x128xf32, #tpu.memory_space<vmem>>) attributes {dimension_semantics = [#tpu.dimension_semantics<parallel>], iteration_bounds = array<i64: 4>, scalar_prefetch = 0 : i64, scratch_operands = 0 : i64, tpu.core_type = #tpu.core_type<tc>, window_params = [{transform_indices = @transform_0, window_bounds = array<i64: 128, 108>}, {pipeline_mode = #tpu.pipeline_mode<synchronous>, transform_indices = @transform_1, window_bounds = array<i64: 108, 128>}, {pipeline_mode = #tpu.pipeline_mode<synchronous>, transform_indices = @transform_2, window_bounds = array<i64: 1, 128>}, {transform_indices = @transform_3, window_bounds = array<i64: 128, 128>}, {transform_indices = @transform_4, window_bounds = array<i64: 1, 1, 128>}, {transform_indices = @transform_5, window_bounds = array<i64: 1, 1, 128>}]} {
    %c0 = arith.constant 0 : index
    %c0_0 = arith.constant 0 : index
    %0 = vector.load %arg1[%c0, %c0_0] : memref<128x108xbf16, #tpu.memory_space<vmem>>, vector<128x108xbf16>
    %c0_1 = arith.constant 0 : index
    %c0_2 = arith.constant 0 : index
    %1 = vector.load %arg2[%c0_1, %c0_2] : memref<108x128xbf16, #tpu.memory_space<vmem>>, vector<108x128xbf16>
    %cst = arith.constant dense<0.000000e+00> : vector<128x128xf32>
    %2 = tpu.matmul %0, %1, %cst {dimension_numbers = #tpu.dot_dimension_numbers<[1], [0], [0], [1], [0, 0, 1, 1], [], []>} : vector<128x108xbf16>, vector<108x128xbf16>, vector<128x128xf32> -> vector<128x128xf32>
    %c0_3 = arith.constant 0 : index
    %c0_4 = arith.constant 0 : index
    %3 = vector.load %arg3[%c0_3, %c0_4] : memref<1x128xf32, #tpu.memory_space<vmem>>, vector<1x128xf32>
    %4 = vector.broadcast %3 : vector<1x128xf32> to vector<128x128xf32>
    %5 = arith.addf %2, %4 : vector<128x128xf32>
    %6 = arith.truncf %5 : vector<128x128xf32> to vector<128x128xbf16>
    %c0_5 = arith.constant 0 : index
    %c0_6 = arith.constant 0 : index
    %7 = vector.load %arg4[%c0_5, %c0_6] : memref<128x128xbf16, #tpu.memory_space<vmem>>, vector<128x128xbf16>
    tpu.vector_store %arg4[%c0_5, %c0_6], %6 {strides = array<i32>} : memref<128x128xbf16, #tpu.memory_space<vmem>>, vector<128x128xbf16>,
    %cst_7 = arith.constant dense<0.000000e+00> : vector<128xf32>
    %8 = vector.multi_reduction <add>, %5, %cst_7 [0] : vector<128x128xf32> to vector<128xf32>
    %9 = vector.shape_cast %8 : vector<128xf32> to vector<1x128xf32>
    %c0_8 = arith.constant 0 : index
    %c0_9 = arith.constant 0 : index
    %c0_10 = arith.constant 0 : index
    %10 = vector.load %arg5[%c0_8, %c0_9, %c0_10] : memref<1x1x128xf32, #tpu.memory_space<vmem>>, vector<1x1x128xf32>
    %11 = vector.shape_cast %10 : vector<1x1x128xf32> to vector<1x128xf32>
    %12 = vector.shape_cast %9 : vector<1x128xf32> to vector<1x1x128xf32>
    tpu.vector_store %arg5[%c0_8, %c0_9, %c0_10], %12 {strides = array<i32>} : memref<1x1x128xf32, #tpu.memory_space<vmem>>, vector<1x1x128xf32>,
    %13 = arith.mulf %5, %5 : vector<128x128xf32>
    %cst_11 = arith.constant dense<0.000000e+00> : vector<128xf32>
    %14 = vector.multi_reduction <add>, %13, %cst_11 [0] : vector<128x128xf32> to vector<128xf32>
    %15 = vector.shape_cast %14 : vector<128xf32> to vector<1x128xf32>
    %c0_12 = arith.constant 0 : index
    %c0_13 = arith.constant 0 : index
    %c0_14 = arith.constant 0 : index
    %16 = vector.load %arg6[%c0_12, %c0_13, %c0_14] : memref<1x1x128xf32, #tpu.memory_space<vmem>>, vector<1x1x128xf32>
    %17 = vector.shape_cast %16 : vector<1x1x128xf32> to vector<1x128xf32>
    %18 = vector.shape_cast %15 : vector<1x128xf32> to vector<1x1x128xf32>
    tpu.vector_store %arg6[%c0_12, %c0_13, %c0_14], %18 {strides = array<i32>} : memref<1x1x128xf32, #tpu.memory_space<vmem>>, vector<1x1x128xf32>,
    return
  }
  func.func @transform_0(%arg0: i32) -> (i32, i32) {
    %c0_i32 = arith.constant 0 : i32
    %c0_i32_0 = arith.constant 0 : i32
    return %arg0, %c0_i32 : i32, i32
  }
  func.func @transform_1(%arg0: i32) -> (i32, i32) {
    %c0_i32 = arith.constant 0 : i32
    %c0_i32_0 = arith.constant 0 : i32
    %c0_i32_1 = arith.constant 0 : i32
    return %c0_i32, %c0_i32_0 : i32, i32
  }
  func.func @transform_2(%arg0: i32) -> (i32, i32) {
    %c0_i32 = arith.constant 0 : i32
    %c0_i32_0 = arith.constant 0 : i32
    %c0_i32_1 = arith.constant 0 : i32
    return %c0_i32, %c0_i32_0 : i32, i32
  }
  func.func @transform_3(%arg0: i32) -> (i32, i32) {
    %c0_i32 = arith.constant 0 : i32
    %c0_i32_0 = arith.constant 0 : i32
    return %arg0, %c0_i32 : i32, i32
  }
  func.func @transform_4(%arg0: i32) -> (i32, i32, i32) {
    %c0_i32 = arith.constant 0 : i32
    %c0_i32_0 = arith.constant 0 : i32
    %c0_i32_1 = arith.constant 0 : i32
    return %arg0, %c0_i32, %c0_i32_0 : i32, i32, i32
  }
  func.func @transform_5(%arg0: i32) -> (i32, i32, i32) {
    %c0_i32 = arith.constant 0 : i32
    %c0_i32_0 = arith.constant 0 : i32
    %c0_i32_1 = arith.constant 0 : i32
    return %arg0, %c0_i32, %c0_i32_0 : i32, i32, i32
  }
}

module attributes {stable_mosaic.version = 11 : i64} {
  func.func @_bn_relu_pool_kernel(%arg0: i32, %arg1: memref<8x2x8x128xbf16, #tpu.memory_space<vmem>>, %arg2: memref<1x128xf32, #tpu.memory_space<vmem>>, %arg3: memref<1x128xf32, #tpu.memory_space<vmem>>, %arg4: memref<8x4x128xf32, #tpu.memory_space<vmem>>) attributes {dimension_semantics = [#tpu.dimension_semantics<parallel>], iteration_bounds = array<i64: 4>, scalar_prefetch = 0 : i64, scratch_operands = 0 : i64, tpu.core_type = #tpu.core_type<tc>, window_params = [{transform_indices = @transform_0, window_bounds = array<i64: 8, 2, 8, 128>}, {pipeline_mode = #tpu.pipeline_mode<synchronous>, transform_indices = @transform_1, window_bounds = array<i64: 1, 128>}, {pipeline_mode = #tpu.pipeline_mode<synchronous>, transform_indices = @transform_2, window_bounds = array<i64: 1, 128>}, {transform_indices = @transform_3, window_bounds = array<i64: 8, 4, 128>}]} {
    %c0 = arith.constant 0 : index
    %c0_0 = arith.constant 0 : index
    %c0_1 = arith.constant 0 : index
    %c0_2 = arith.constant 0 : index
    %0 = vector.load %arg1[%c0, %c0_0, %c0_1, %c0_2] : memref<8x2x8x128xbf16, #tpu.memory_space<vmem>>, vector<8x2x8x128xbf16>
    %1 = arith.extf %0 : vector<8x2x8x128xbf16> to vector<8x2x8x128xf32>
    %c0_3 = arith.constant 0 : index
    %c0_4 = arith.constant 0 : index
    %2 = vector.load %arg2[%c0_3, %c0_4] : memref<1x128xf32, #tpu.memory_space<vmem>>, vector<1x128xf32>
    %3 = vector.shape_cast %2 : vector<1x128xf32> to vector<1x1x1x128xf32>
    %4 = vector.broadcast %3 : vector<1x1x1x128xf32> to vector<8x2x8x128xf32>
    %5 = arith.mulf %1, %4 : vector<8x2x8x128xf32>
    %c0_5 = arith.constant 0 : index
    %c0_6 = arith.constant 0 : index
    %6 = vector.load %arg3[%c0_5, %c0_6] : memref<1x128xf32, #tpu.memory_space<vmem>>, vector<1x128xf32>
    %7 = vector.shape_cast %6 : vector<1x128xf32> to vector<1x1x1x128xf32>
    %8 = vector.broadcast %7 : vector<1x1x1x128xf32> to vector<8x2x8x128xf32>
    %9 = arith.addf %5, %8 : vector<8x2x8x128xf32>
    %cst = arith.constant 0.000000e+00 : f32
    %10 = vector.broadcast %cst : f32 to vector<8x2x8x128xf32>
    %11 = arith.maximumf %9, %10 : vector<8x2x8x128xf32>
    %12 = vector.extract_strided_slice %11 {offsets = [0, 0, 0, 0], sizes = [8, 1, 8, 128], strides = [1, 1, 1, 1]} : vector<8x2x8x128xf32> to vector<8x1x8x128xf32>
    %13 = vector.shape_cast %12 : vector<8x1x8x128xf32> to vector<8x8x128xf32>
    %14 = vector.extract_strided_slice %11 {offsets = [0, 1, 0, 0], sizes = [8, 1, 8, 128], strides = [1, 1, 1, 1]} : vector<8x2x8x128xf32> to vector<8x1x8x128xf32>
    %15 = vector.shape_cast %14 : vector<8x1x8x128xf32> to vector<8x8x128xf32>
    %16 = arith.maximumf %13, %15 : vector<8x8x128xf32>
    %17 = vector.shape_cast %16 : vector<8x8x128xf32> to vector<8x4x2x128xf32>
    %cst_7 = arith.constant dense<0xFF800000> : vector<8x4x128xf32>
    %18 = vector.multi_reduction <maximumf>, %17, %cst_7 [2] : vector<8x4x2x128xf32> to vector<8x4x128xf32>
    %c0_8 = arith.constant 0 : index
    %c0_9 = arith.constant 0 : index
    %c0_10 = arith.constant 0 : index
    %19 = vector.load %arg4[%c0_8, %c0_9, %c0_10] : memref<8x4x128xf32, #tpu.memory_space<vmem>>, vector<8x4x128xf32>
    tpu.vector_store %arg4[%c0_8, %c0_9, %c0_10], %18 {strides = array<i32>} : memref<8x4x128xf32, #tpu.memory_space<vmem>>, vector<8x4x128xf32>,
    return
  }
  func.func @transform_0(%arg0: i32) -> (i32, i32, i32, i32) {
    %c0_i32 = arith.constant 0 : i32
    %c0_i32_0 = arith.constant 0 : i32
    %c0_i32_1 = arith.constant 0 : i32
    %c0_i32_2 = arith.constant 0 : i32
    return %arg0, %c0_i32, %c0_i32_0, %c0_i32_1 : i32, i32, i32, i32
  }
  func.func @transform_1(%arg0: i32) -> (i32, i32) {
    %c0_i32 = arith.constant 0 : i32
    %c0_i32_0 = arith.constant 0 : i32
    %c0_i32_1 = arith.constant 0 : i32
    return %c0_i32, %c0_i32_0 : i32, i32
  }
  func.func @transform_2(%arg0: i32) -> (i32, i32) {
    %c0_i32 = arith.constant 0 : i32
    %c0_i32_0 = arith.constant 0 : i32
    %c0_i32_1 = arith.constant 0 : i32
    return %c0_i32, %c0_i32_0 : i32, i32
  }
  func.func @transform_3(%arg0: i32) -> (i32, i32, i32) {
    %c0_i32 = arith.constant 0 : i32
    %c0_i32_0 = arith.constant 0 : i32
    %c0_i32_1 = arith.constant 0 : i32
    return %arg0, %c0_i32, %c0_i32_0 : i32, i32, i32
  }
}

</mosaic_0001>

<llo_original>
// kernel: conv3d_block_forward.2
$region0: #{conv3d_block_forward.2}
  #allocation0 [shape = 'u32[]', space=smem, size = 0x4, offset = 0x4, fixed_abs, tag = 'smem constant byte address 0x4 - core index']
  #allocation1 [shape = 'u32[72,128]{1,0:T(1,128)}', space=vmem, size = 0x9000, scoped, tag = 'internal scratch']
  %s0 = inlined_call_operand.vmem [shape: bf16[512,108], index: 0, kind: input, shape index: {}]
  %s1 = inlined_call_operand.vmem [shape: bf16[108,128], index: 1, kind: input, shape index: {}]
  %s2 = inlined_call_operand.vmem [shape: f32[1,128], index: 2, kind: input, shape index: {}]
  %s3 = inlined_call_operand.vmem [shape: bf16[512,128], index: 3, kind: output, shape index: {0}]
  %s4 = inlined_call_operand.vmem [shape: f32[4,1,128], index: 4, kind: output, shape index: {1}]
  %s5 = inlined_call_operand.vmem [shape: f32[4,1,128], index: 5, kind: output, shape index: {2}]
  %6 = xla_tuple %s3, %s4, %s5
  %s7 = sld [smem:[#allocation0]]
  $region61: #{conv3d_block_forward.2} parent=0
    _
  %s9 = ssub.s32 1, %s7
  %s10 = scalar_select 0, %s9, %s7
  loop: start=0, step=1, limit=6
  $region2: #{conv3d_block_forward.2} parent=0 // loop_pre_header
    _
  $region3: #{conv3d_block_forward.2} parent=0 // loop_header
    %s12 = sphi 0, %s16
    %p13 = scmp.ge.s32.totalorder %s12, 6
    %s22 = sphi 0, %s24
    %s25 = sphi 0, %s22
    %s26 = sphi 0, %s25
    %s42 = sphi 0, %s26
    %s46 = sphi 0, %s46
    %s48 = sphi 0, %s46
    %s49 = sphi 0, %s48
    %s63 = sphi 0, %s49
    %s67 = sphi 0, %s67
    %s69 = sphi 0, %s67
    %s70 = sphi 0, %s69
    %s84 = sphi 0, %s70
    %s90 = sphi 0, %s92
    %s93 = sphi 0, %s90
    %s94 = sphi 0, %s93
    %s110 = sphi 0, %s94
    %s116 = sphi 0, %s118
    %s119 = sphi 0, %s116
    %s120 = sphi 0, %s119
    %s136 = sphi 0, %s120
    %s142 = sphi 0, %s144
    %s145 = sphi 0, %s142
    %s146 = sphi 0, %s145
    %s162 = sphi 0, %s146
  $region4: #{conv3d_block_forward.2} parent=0 // loop_header_branch
    %15 = sbr.rel (%p13) target = $region8
  $region5: #{conv3d_block_forward.2} parent=0 // loop_body
    %s17 = ssub.s32 %s12, 1
    %s18 = ssub.s32 %s12, 2
    %s19 = sadd.s32 %s12, 1
    %s20 = ssub.s32 %s12, %s19
    %p21 = scmp.eq.s32.totalorder %s20, 0
    %s23 = sadd.s32 %s22, 1
    %s24 = scalar_select %p21, %s22, %s23
    %p27 = pneg %p21
    %p28 = scmp.eq.s32.totalorder %s12, 3
    %p29 = por %p27, %p28
    %p30 = scmp.ne.s32.totalorder %s22, %s25
    %p31 = scmp.eq.s32.totalorder %s12, 0
    %p32 = por %p30, %p31
    %p33 = scmp.ne.s32.totalorder %s22, %s25
    %p34 = scmp.eq.s32.totalorder %s17, 3
    %p35 = por %p33, %p34
    %p36 = scmp.ne.s32.totalorder %s25, %s26
    %p37 = scmp.eq.s32.totalorder %s17, 0
    %p38 = por %p36, %p37
    %p39 = scmp.ne.s32.totalorder %s25, %s26
    %p40 = scmp.eq.s32.totalorder %s18, 3
    %p41 = por %p39, %p40
    %p43 = scmp.ne.s32.totalorder %s26, %s42
    %p44 = scmp.eq.s32.totalorder %s18, 0
    %p45 = por %p43, %p44
    %s47 = sadd.s32 %s46, 1
    %p50 = scmp.eq.s32.totalorder %s12, 3
    %p51 = scmp.ne.s32.totalorder %s46, %s48
    %p52 = scmp.eq.s32.totalorder %s12, 0
    %p53 = por %p51, %p52
    %p54 = scmp.ne.s32.totalorder %s46, %s48
    %p55 = scmp.eq.s32.totalorder %s17, 3
    %p56 = por %p54, %p55
    %p57 = scmp.ne.s32.totalorder %s48, %s49
    %p58 = scmp.eq.s32.totalorder %s17, 0
    %p59 = por %p57, %p58
    %p60 = scmp.ne.s32.totalorder %s48, %s49
    %p61 = scmp.eq.s32.totalorder %s18, 3
    %p62 = por %p60, %p61
    %p64 = scmp.ne.s32.totalorder %s49, %s63
    %p65 = scmp.eq.s32.totalorder %s18, 0
    %p66 = por %p64, %p65
    %s68 = sadd.s32 %s67, 1
    %p71 = scmp.eq.s32.totalorder %s12, 3
    %p72 = scmp.ne.s32.totalorder %s67, %s69
    %p73 = scmp.eq.s32.totalorder %s12, 0
    %p74 = por %p72, %p73
    %p75 = scmp.ne.s32.totalorder %s67, %s69
    %p76 = scmp.eq.s32.totalorder %s17, 3
    %p77 = por %p75, %p76
    %p78 = scmp.ne.s32.totalorder %s69, %s70
    %p79 = scmp.eq.s32.totalorder %s17, 0
    %p80 = por %p78, %p79
    %p81 = scmp.ne.s32.totalorder %s69, %s70
    %p82 = scmp.eq.s32.totalorder %s18, 3
    %p83 = por %p81, %p82
    %p85 = scmp.ne.s32.totalorder %s70, %s84
    %p86 = scmp.eq.s32.totalorder %s18, 0
    %p87 = por %p85, %p86
    %s88 = ssub.s32 %s12, %s19
    %p89 = scmp.eq.s32.totalorder %s88, 0
    %s91 = sadd.s32 %s90, 1
    %s92 = scalar_select %p89, %s90, %s91
    %p95 = pneg %p89
    %p96 = scmp.eq.s32.totalorder %s12, 3
    %p97 = por %p95, %p96
    %p98 = scmp.ne.s32.totalorder %s90, %s93
    %p99 = scmp.eq.s32.totalorder %s12, 0
    %p100 = por %p98, %p99
    %p101 = scmp.ne.s32.totalorder %s90, %s93
    %p102 = scmp.eq.s32.totalorder %s17, 3
    %p103 = por %p101, %p102
    %p104 = scmp.ne.s32.totalorder %s93, %s94
    %p105 = scmp.eq.s32.totalorder %s17, 0
    %p106 = por %p104, %p105
    %p107 = scmp.ne.s32.totalorder %s93, %s94
    %p108 = scmp.eq.s32.totalorder %s18, 3
    %p109 = por %p107, %p108
    %p111 = scmp.ne.s32.totalorder %s94, %s110
    %p112 = scmp.eq.s32.totalorder %s18, 0
    %p113 = por %p111, %p112
    %s114 = ssub.s32 %s12, %s19
    %p115 = scmp.eq.s32.totalorder %s114, 0
    %s117 = sadd.s32 %s116, 1
    %s118 = scalar_select %p115, %s116, %s117
    %p121 = pneg %p115
    %p122 = scmp.eq.s32.totalorder %s12, 3
    %p123 = por %p121, %p122
    %p124 = scmp.ne.s32.totalorder %s116, %s119
    %p125 = scmp.eq.s32.totalorder %s12, 0
    %p126 = por %p124, %p125
    %p127 = scmp.ne.s32.totalorder %s116, %s119
    %p128 = scmp.eq.s32.totalorder %s17, 3
    %p129 = por %p127, %p128
    %p130 = scmp.ne.s32.totalorder %s119, %s120
    %p131 = scmp.eq.s32.totalorder %s17, 0
    %p132 = por %p130, %p131
    %p133 = scmp.ne.s32.totalorder %s119, %s120
    %p134 = scmp.eq.s32.totalorder %s18, 3
    %p135 = por %p133, %p134
    %p137 = scmp.ne.s32.totalorder %s120, %s136
    %p138 = scmp.eq.s32.totalorder %s18, 0
    %p139 = por %p137, %p138
    %s140 = ssub.s32 %s12, %s19
    %p141 = scmp.eq.s32.totalorder %s140, 0
    %s143 = sadd.s32 %s142, 1
    %s144 = scalar_select %p141, %s142, %s143
    %p147 = pneg %p141
    %p148 = scmp.eq.s32.totalorder %s12, 3
    %p149 = por %p147, %p148
    %p150 = scmp.ne.s32.totalorder %s142, %s145
    %p151 = scmp.eq.s32.totalorder %s12, 0
    %p152 = por %p150, %p151
    %p153 = scmp.ne.s32.totalorder %s142, %s145
    %p154 = scmp.eq.s32.totalorder %s17, 3
    %p155 = por %p153, %p154
    %p156 = scmp.ne.s32.totalorder %s145, %s146
    %p157 = scmp.eq.s32.totalorder %s17, 0
    %p158 = por %p156, %p157
    %p159 = scmp.ne.s32.totalorder %s145, %s146
    %p160 = scmp.eq.s32.totalorder %s18, 3
    %p161 = por %p159, %p160
    %p163 = scmp.ne.s32.totalorder %s146, %s162
    %p164 = scmp.eq.s32.totalorder %s18, 0
    %p165 = por %p163, %p164
    %p166 = scmp.le.s32.totalorder 1, %s12
    %p167 = scmp.lt.s32.totalorder %s12, 5
    %p168 = pnand %p166, %p167
    %p169 = pneg %p168
    // Predicated region
    $region9: #{conv3d_block_forward.2} parent=5 // pred_check
      _
    $region10: #{conv3d_block_forward.2} parent=5 // pred_check_branch
      %171 = sbr.rel (%p168) target = $region12
    $region11: #{conv3d_block_forward.2} parent=5 // pred_region
      %s172 = ssub.s32 %s12, 1
      // Predicated region
      $region13: #{conv3d_block_forward.2} parent=11 // pred_check
        %p173 = pneg %p59
      $region14: #{conv3d_block_forward.2} parent=11 // pred_check_branch
        %175 = sbr.rel (%p173) target = $region16
      $region15: #{conv3d_block_forward.2} parent=11 // pred_region
        _
      $region16: #{conv3d_block_forward.2} parent=11 // pred_fallthru
        _
      // Predicated region
      $region17: #{conv3d_block_forward.2} parent=11 // pred_check
        %p176 = pneg %p80
      $region18: #{conv3d_block_forward.2} parent=11 // pred_check_branch
        %178 = sbr.rel (%p176) target = $region20
      $region19: #{conv3d_block_forward.2} parent=11 // pred_region
        _
      $region20: #{conv3d_block_forward.2} parent=11 // pred_fallthru
        _
    $region12: #{conv3d_block_forward.2} parent=5 // pred_fallthru
      _
    %p179 = scmp.lt.s32.totalorder %s12, 4
    // Predicated region
    $region21: #{conv3d_block_forward.2} parent=5 // pred_check
      %p180 = pneg %p179
    $region22: #{conv3d_block_forward.2} parent=5 // pred_check_branch
      %182 = sbr.rel (%p180) target = $region24
    $region23: #{conv3d_block_forward.2} parent=5 // pred_region
      // Predicated region
      $region25: #{conv3d_block_forward.2} parent=23 // pred_check
        %p183 = pneg %p32
      $region26: #{conv3d_block_forward.2} parent=23 // pred_check_branch
        %185 = sbr.rel (%p183) target = $region28
      $region27: #{conv3d_block_forward.2} parent=23 // pred_region
        %s186 = smul.u32 16, %s12
        %p187 = scmp.lt.s32.totalorder %s186, 63
        %s188 = scalar_select %p187, %s186, 63
        %s189 = smul.addr %s188, 4
        %s190 = scalar_lea.vmem %s0, %s189
        %s191 = smul.u32 16, %s12
      $region28: #{conv3d_block_forward.2} parent=23 // pred_fallthru
        _
    $region24: #{conv3d_block_forward.2} parent=5 // pred_fallthru
      _
    %p192 = scmp.le.s32.totalorder 1, %s12
    %p193 = scmp.lt.s32.totalorder %s12, 5
    %p194 = pnand %p192, %p193
    %p195 = pneg %p194
    // Predicated region
    $region29: #{conv3d_block_forward.2} parent=5 // pred_check
      _
    $region30: #{conv3d_block_forward.2} parent=5 // pred_check_branch
      %197 = sbr.rel (%p194) target = $region32
    $region31: #{conv3d_block_forward.2} parent=5 // pred_region
      %s198 = ssub.s32 %s12, 1
      %s199 = smul.u32 16, %s17
      %p200 = scmp.lt.s32.totalorder %s199, 63
      %s201 = scalar_select %p200, %s199, 63
      %s202 = smul.addr %s201, 4
      %s203 = scalar_lea.vmem %s0, %s202
      %p204 = pneg %p38
      %p205 = pneg %p35
      %p206 = pneg %p59
      %p207 = pneg %p56
      %p208 = pneg %p80
      %p209 = pneg %p77
      %p210 = pneg %p106
      %p211 = pneg %p103
      %s212 = smul.u32 16, %s17
      %p213 = scmp.lt.s32.totalorder %s212, 63
      %s214 = scalar_select %p213, %s212, 63
      %s215 = smul.addr %s214, 4
      %s216 = scalar_lea.vmem %s3, %s215
      %p217 = pneg %p132
      %p218 = pneg %p129
      %p219 = scmp.lt.s32.totalorder %s17, 3
      %s220 = scalar_select %p219, %s17, 3
      %s221 = scalar_lea.vmem %s4, %s220
      %p222 = pneg %p158
      %p223 = pneg %p155
      %p224 = scmp.lt.s32.totalorder %s17, 3
      %s225 = scalar_select %p224, %s17, 3
      %s226 = scalar_lea.vmem %s5, %s225
      %s227 = smul.u32 16, %s17
      %p228 = scmp.lt.s32.totalorder %s227, 63
      %s229 = scalar_select %p228, %s227, 63
      %s230 = smul.addr %s229, 4
      %s231 = scalar_lea.vmem %s0, %s230
      %s232 = smul.u32 16, %s17
      %s233 = smul.u32 16, %s17
      %p234 = scmp.lt.s32.totalorder %s233, 63
      %s235 = scalar_select %p234, %s233, 63
      %s236 = smul.addr %s235, 4
      %s237 = scalar_lea.vmem %s3, %s236
      %s238 = smul.u32 16, %s17
      %p239 = scmp.lt.s32.totalorder %s17, 3
      %s240 = scalar_select %p239, %s17, 3
      %s241 = scalar_lea.vmem %s4, %s240
      %p242 = scmp.lt.s32.totalorder %s17, 3
      %s243 = scalar_select %p242, %s17, 3
      %s244 = scalar_lea.vmem %s5, %s243
      %v246 = vld [vmem:[%s231] sm:$0xf]
      %v247 = vld [vmem:[%s231 + $0x4] sm:$0xf]
      %v248 = vld [vmem:[%s231 + $0x8] sm:$0xf]
      %v249 = vld [vmem:[%s231 + $0xc] sm:$0xf]
      %v250 = vld [vmem:[%s231 + $0x10] sm:$0xf]
      %v251 = vld [vmem:[%s231 + $0x14] sm:$0xf]
      %v252 = vld [vmem:[%s231 + $0x18] sm:$0xf]
      %v253 = vld [vmem:[%s231 + $0x1c] sm:$0xf]
      %v254 = vld [vmem:[%s231 + $0x20] sm:$0xf]
      %v255 = vld [vmem:[%s231 + $0x24] sm:$0xf]
      %v256 = vld [vmem:[%s231 + $0x28] sm:$0xf]
      %v257 = vld [vmem:[%s231 + $0x2c] sm:$0xf]
      %v258 = vld [vmem:[%s231 + $0x30] sm:$0xf]
      %v259 = vld [vmem:[%s231 + $0x34] sm:$0xf]
      %v260 = vld [vmem:[%s231 + $0x38] sm:$0xf]
      %v261 = vld [vmem:[%s231 + $0x3c] sm:$0xf]
      %v262 = vld [vmem:[%s1] sm:$0xf]
      %v263 = vld [vmem:[%s1 + $0x4] sm:$0xf]
      %v264 = vld [vmem:[%s1 + $0x8] sm:$0xf]
      %v265 = vld [vmem:[%s1 + $0xc] sm:$0xf]
      %v266 = vld [vmem:[%s1 + $0x10] sm:$0xf]
      %v267 = vld [vmem:[%s1 + $0x14] sm:$0xf]
      %v268 = vld [vmem:[%s1 + $0x18] sm:$0xf]
      %v269 = vld [vmem:[%s1 + $0x1c] sm:$0xf]
      %v270 = vld [vmem:[%s1 + $0x20] sm:$0xf]
      %v271 = vld [vmem:[%s1 + $0x24] sm:$0xf]
      %v272 = vld [vmem:[%s1 + $0x28] sm:$0xf]
      %v273 = vld [vmem:[%s1 + $0x2c] sm:$0xf]
      %v274 = vld [vmem:[%s1 + $0x30] sm:$0xf]
      %v275 = vld [vmem:[%s1 + $0x34] sm:$0x3]
      %v276 = vld [vmem:[%s2] sm:$0x1]
      %v278 = vperm.slane %v276, 0
      %v296 = vunpack.c.l.b16 %v246
      %v297 = vunpack.c.l.b16 %v247
      %v298 = vunpack.c.l.b16 %v248
      %v299 = vunpack.c.l.b16 %v249
      %v300 = vunpack.c.l.b16 %v250
      %v301 = vunpack.c.l.b16 %v251
      %v302 = vunpack.c.l.b16 %v252
      %v303 = vunpack.c.l.b16 %v253
      %v304 = vunpack.c.l.b16 %v254
      %v305 = vunpack.c.l.b16 %v255
      %v306 = vunpack.c.l.b16 %v256
      %v307 = vunpack.c.l.b16 %v257
      %v308 = vunpack.c.l.b16 %v258
      %v309 = vunpack.c.l.b16 %v259
      %v310 = vunpack.c.l.b16 %v260
      %v311 = vunpack.c.l.b16 %v261
      %v312 = vpack.c.b16 %v297, %v296
      %v313 = vpack.c.b16 %v299, %v298
      %v314 = vpack.c.b16 %v301, %v300
      %v315 = vpack.c.b16 %v303, %v302
      %v316 = vpack.c.b16 %v305, %v304
      %v317 = vpack.c.b16 %v307, %v306
      %v318 = vpack.c.b16 %v309, %v308
      %v319 = vpack.c.b16 %v311, %v310
      %v334 = vunpack.c.l.b16 %v262
      %v335 = vunpack.c.l.b16 %v263
      %v336 = vunpack.c.l.b16 %v264
      %v337 = vunpack.c.l.b16 %v265
      %v338 = vunpack.c.l.b16 %v266
      %v339 = vunpack.c.l.b16 %v267
      %v340 = vunpack.c.l.b16 %v268
      %v341 = vunpack.c.l.b16 %v269
      %v342 = vunpack.c.l.b16 %v270
      %v343 = vunpack.c.l.b16 %v271
      %v344 = vunpack.c.l.b16 %v272
      %v345 = vunpack.c.l.b16 %v273
      %v346 = vunpack.c.l.b16 %v274
      %v347 = vunpack.c.l.b16 %v275
      %v348 = vpack.c.b16 %v335, %v334
      %v349 = vpack.c.b16 %v337, %v336
      %v350 = vpack.c.b16 %v339, %v338
      %v351 = vpack.c.b16 %v341, %v340
      %v352 = vpack.c.b16 %v343, %v342
      %v353 = vpack.c.b16 %v345, %v344
      %v354 = vpack.c.b16 %v347, %v346
      %vm361 = vcmask 883712
      %v363 = vsel %vm361, %v312, 0
      %v366 = vsel %vm361, %v313, 0
      %v369 = vsel %vm361, %v314, 0
      %v372 = vsel %vm361, %v315, 0
      %v375 = vsel %vm361, %v316, 0
      %v378 = vsel %vm361, %v317, 0
      %v381 = vsel %vm361, %v318, 0
      %v384 = vsel %vm361, %v319, 0
      %vm386 = vcmask 1045504
      %v388 = vsel %vm386, %v354, 0
      %390 = vmatpush.bf16.msra.mxu0 0
      %391 = vmatpush.bf16.msra.mxu0 %v388
      %392 = vmatpush.bf16.msra.mxu0 %v353
      %393 = vmatpush.bf16.msra.mxu0 %v352
      %394 = vmatpush.bf16.msra.mxu0 %v351
      %395 = vmatpush.bf16.msra.mxu0 %v350
      %396 = vmatpush.bf16.msra.mxu0 %v349
      %397 = vmatpush.bf16.msra.mxu0 %v348
      %398 = vmatmul.bf16.gmra.mxu0 %v363
      %v399 = vpop.f32.mrf.mxu0
      %v400 = vadd.f32 %v278, %v399
      %v401 = vpop.f32.mrf.mxu0
      %v402 = vadd.f32 %v278, %v401
      %403 = vmatmul.bf16.gmra.mxu0 %v366
      %v404 = vpop.f32.mrf.mxu0
      %v405 = vadd.f32 %v278, %v404
      %v406 = vpop.f32.mrf.mxu0
      %v407 = vadd.f32 %v278, %v406
      %408 = vmatmul.bf16.gmra.mxu0 %v369
      %v409 = vpop.f32.mrf.mxu0
      %v410 = vadd.f32 %v278, %v409
      %v411 = vpop.f32.mrf.mxu0
      %v412 = vadd.f32 %v278, %v411
      %413 = vmatmul.bf16.gmra.mxu0 %v372
      %v414 = vpop.f32.mrf.mxu0
      %v415 = vadd.f32 %v278, %v414
      %v416 = vpop.f32.mrf.mxu0
      %v417 = vadd.f32 %v278, %v416
      %418 = vmatmul.bf16.gmra.mxu0 %v375
      %v419 = vpop.f32.mrf.mxu0
      %v420 = vadd.f32 %v278, %v419
      %v421 = vpop.f32.mrf.mxu0
      %v422 = vadd.f32 %v278, %v421
      %423 = vmatmul.bf16.gmra.mxu0 %v378
      %v424 = vpop.f32.mrf.mxu0
      %v425 = vadd.f32 %v278, %v424
      %v426 = vpop.f32.mrf.mxu0
      %v427 = vadd.f32 %v278, %v426
      %428 = vmatmul.bf16.gmra.mxu0 %v381
      %v429 = vpop.f32.mrf.mxu0
      %v430 = vadd.f32 %v278, %v429
      %v431 = vpop.f32.mrf.mxu0
      %v432 = vadd.f32 %v278, %v431
      %433 = vmatmul.bf16.gmra.mxu0 %v384
      %v434 = vpop.f32.mrf.mxu0
      %v435 = vadd.f32 %v278, %v434
      %v436 = vpop.f32.mrf.mxu0
      %v437 = vadd.f32 %v278, %v436
      %438 = vdwg.mxu0
      %v439 = vpack.c.bf16 %v400, %v400
      %v440 = vpack.c.bf16 %v402, %v402
      %v441 = vpack.c.bf16 %v405, %v405
      %v442 = vpack.c.bf16 %v407, %v407
      %v443 = vpack.c.bf16 %v410, %v410
      %v444 = vpack.c.bf16 %v412, %v412
      %v445 = vpack.c.bf16 %v415, %v415
      %v446 = vpack.c.bf16 %v417, %v417
      %v447 = vpack.c.bf16 %v420, %v420
      %v448 = vpack.c.bf16 %v422, %v422
      %v449 = vpack.c.bf16 %v425, %v425
      %v450 = vpack.c.bf16 %v427, %v427
      %v451 = vpack.c.bf16 %v430, %v430
      %v452 = vpack.c.bf16 %v432, %v432
      %v453 = vpack.c.bf16 %v435, %v435
      %v454 = vpack.c.bf16 %v437, %v437
      %455 = vst [vmem:[%s237] sm:$0xf] %v439
      %456 = vst [vmem:[%s237 + $0x4] sm:$0xf] %v440
      %457 = vst [vmem:[%s237 + $0x8] sm:$0xf] %v441
      %458 = vst [vmem:[%s237 + $0xc] sm:$0xf] %v442
      %459 = vst [vmem:[%s237 + $0x10] sm:$0xf] %v443
      %460 = vst [vmem:[%s237 + $0x14] sm:$0xf] %v444
      %461 = vst [vmem:[%s237 + $0x18] sm:$0xf] %v445
      %462 = vst [vmem:[%s237 + $0x1c] sm:$0xf] %v446
      %463 = vst [vmem:[%s237 + $0x20] sm:$0xf] %v447
      %464 = vst [vmem:[%s237 + $0x24] sm:$0xf] %v448
      %465 = vst [vmem:[%s237 + $0x28] sm:$0xf] %v449
      %466 = vst [vmem:[%s237 + $0x2c] sm:$0xf] %v450
      %467 = vst [vmem:[%s237 + $0x30] sm:$0xf] %v451
      %468 = vst [vmem:[%s237 + $0x34] sm:$0xf] %v452
      %469 = vst [vmem:[%s237 + $0x38] sm:$0xf] %v453
      %470 = vst [vmem:[%s237 + $0x3c] sm:$0xf] %v454
      %v471 = vadd.f32 %v400, %v402
      %v472 = vadd.f32 %v471, %v405
      %v473 = vadd.f32 %v472, %v407
      %v474 = vadd.f32 %v473, %v410
      %v475 = vadd.f32 %v474, %v412
      %v476 = vadd.f32 %v475, %v415
      %v477 = vadd.f32 %v476, %v417
      %v478 = vadd.f32 %v477, %v420
      %v479 = vadd.f32 %v478, %v422
      %v480 = vadd.f32 %v479, %v425
      %v481 = vadd.f32 %v480, %v427
      %v482 = vadd.f32 %v481, %v430
      %v483 = vadd.f32 %v482, %v432
      %v484 = vadd.f32 %v483, %v435
      %v485 = vadd.f32 %v484, %v437
      %v486 = vrot.slane %v485, 4
      %v487 = vadd.f32 %v485, %v486
      %v488 = vrot.slane %v487, 2
      %v489 = vadd.f32 %v487, %v488
      %v490 = vrot.slane %v489, 1
      %v491 = vadd.f32 %v489, %v490
      %492 = vst [vmem:[%s241] sm:$0x1] %v491
      %v493 = vmul.f32 %v400, %v400
      %v494 = vmul.f32 %v402, %v402
      %v495 = vmul.f32 %v405, %v405
      %v496 = vmul.f32 %v407, %v407
      %v497 = vmul.f32 %v410, %v410
      %v498 = vmul.f32 %v412, %v412
      %v499 = vmul.f32 %v415, %v415
      %v500 = vmul.f32 %v417, %v417
      %v501 = vmul.f32 %v420, %v420
      %v502 = vmul.f32 %v422, %v422
      %v503 = vmul.f32 %v425, %v425
      %v504 = vmul.f32 %v427, %v427
      %v505 = vmul.f32 %v430, %v430
      %v506 = vmul.f32 %v432, %v432
      %v507 = vmul.f32 %v435, %v435
      %v508 = vmul.f32 %v437, %v437
      %v509 = vadd.f32 %v493, %v494
      %v510 = vadd.f32 %v509, %v495
      %v511 = vadd.f32 %v510, %v496
      %v512 = vadd.f32 %v511, %v497
      %v513 = vadd.f32 %v512, %v498
      %v514 = vadd.f32 %v513, %v499
      %v515 = vadd.f32 %v514, %v500
      %v516 = vadd.f32 %v515, %v501
      %v517 = vadd.f32 %v516, %v502
      %v518 = vadd.f32 %v517, %v503
      %v519 = vadd.f32 %v518, %v504
      %v520 = vadd.f32 %v519, %v505
      %v521 = vadd.f32 %v520, %v506
      %v522 = vadd.f32 %v521, %v507
      %v523 = vadd.f32 %v522, %v508
      %v524 = vrot.slane %v523, 4
      %v525 = vadd.f32 %v523, %v524
      %v526 = vrot.slane %v525, 2
      %v527 = vadd.f32 %v525, %v526
      %v528 = vrot.slane %v527, 1
      %v529 = vadd.f32 %v527, %v528
      %530 = vst [vmem:[%s244] sm:$0x1] %v529
      %s531 = smul.u32 16, %s17
      %p532 = scmp.lt.s32.totalorder %s531, 63
      %s533 = scalar_select %p532, %s531, 63
      %s534 = smul.addr %s533, 4
      %s535 = scalar_lea.vmem %s3, %s534
      %p536 = scmp.lt.s32.totalorder %s17, 3
      %s537 = scalar_select %p536, %s17, 3
      %s538 = scalar_lea.vmem %s4, %s537
      %p539 = scmp.lt.s32.totalorder %s17, 3
      %s540 = scalar_select %p539, %s17, 3
      %s541 = scalar_lea.vmem %s5, %s540
      // Predicated region
      $region33: #{conv3d_block_forward.2} parent=31 // pred_check
        %p542 = pneg %p103
      $region34: #{conv3d_block_forward.2} parent=31 // pred_check_branch
        %544 = sbr.rel (%p542) target = $region36
      $region35: #{conv3d_block_forward.2} parent=31 // pred_region
        %s545 = smul.u32 16, %s17
      $region36: #{conv3d_block_forward.2} parent=31 // pred_fallthru
        _
      // Predicated region
      $region37: #{conv3d_block_forward.2} parent=31 // pred_check
        %p546 = pneg %p129
      $region38: #{conv3d_block_forward.2} parent=31 // pred_check_branch
        %548 = sbr.rel (%p546) target = $region40
      $region39: #{conv3d_block_forward.2} parent=31 // pred_region
        _
      $region40: #{conv3d_block_forward.2} parent=31 // pred_fallthru
        _
      // Predicated region
      $region41: #{conv3d_block_forward.2} parent=31 // pred_check
        %p549 = pneg %p155
      $region42: #{conv3d_block_forward.2} parent=31 // pred_check_branch
        %551 = sbr.rel (%p549) target = $region44
      $region43: #{conv3d_block_forward.2} parent=31 // pred_region
        _
      $region44: #{conv3d_block_forward.2} parent=31 // pred_fallthru
        _
    $region32: #{conv3d_block_forward.2} parent=5 // pred_fallthru
      _
    %p552 = scmp.le.s32.totalorder 2, %s12
    // Predicated region
    $region45: #{conv3d_block_forward.2} parent=5 // pred_check
      %p553 = pneg %p552
    $region46: #{conv3d_block_forward.2} parent=5 // pred_check_branch
      %555 = sbr.rel (%p553) target = $region48
    $region47: #{conv3d_block_forward.2} parent=5 // pred_region
      %s556 = ssub.s32 %s12, 2
      // Predicated region
      $region49: #{conv3d_block_forward.2} parent=47 // pred_check
        %p557 = pneg %p109
      $region50: #{conv3d_block_forward.2} parent=47 // pred_check_branch
        %559 = sbr.rel (%p557) target = $region52
      $region51: #{conv3d_block_forward.2} parent=47 // pred_region
        %s560 = smul.u32 16, %s18
        %p561 = scmp.lt.s32.totalorder %s560, 63
        %s562 = scalar_select %p561, %s560, 63
        %s563 = smul.addr %s562, 4
        %s564 = scalar_lea.vmem %s3, %s563
      $region52: #{conv3d_block_forward.2} parent=47 // pred_fallthru
        _
      // Predicated region
      $region53: #{conv3d_block_forward.2} parent=47 // pred_check
        %p565 = pneg %p135
      $region54: #{conv3d_block_forward.2} parent=47 // pred_check_branch
        %567 = sbr.rel (%p565) target = $region56
      $region55: #{conv3d_block_forward.2} parent=47 // pred_region
        %p568 = scmp.lt.s32.totalorder %s18, 3
        %s569 = scalar_select %p568, %s18, 3
        %s570 = scalar_lea.vmem %s4, %s569
      $region56: #{conv3d_block_forward.2} parent=47 // pred_fallthru
        _
      // Predicated region
      $region57: #{conv3d_block_forward.2} parent=47 // pred_check
        %p571 = pneg %p161
      $region58: #{conv3d_block_forward.2} parent=47 // pred_check_branch
        %573 = sbr.rel (%p571) target = $region60
      $region59: #{conv3d_block_forward.2} parent=47 // pred_region
        %p574 = scmp.lt.s32.totalorder %s18, 3
        %s575 = scalar_select %p574, %s18, 3
        %s576 = scalar_lea.vmem %s5, %s575
      $region60: #{conv3d_block_forward.2} parent=47 // pred_fallthru
        _
    $region48: #{conv3d_block_forward.2} parent=5 // pred_fallthru
      _
  $region6: #{conv3d_block_forward.2} parent=0 // loop_footer
    %s16 = sadd.s32 1, %s12
  $region7: #{conv3d_block_forward.2} parent=0 // loop_footer_branch
    %11 = sbr.rel target = $region3
  $region8: #{conv3d_block_forward.2} parent=0 // loop_exit
    _

// kernel: conv3d_block_forward.3
$region0: #{conv3d_block_forward.3}
  #allocation0 [shape = 'u32[]', space=smem, size = 0x4, offset = 0x4, fixed_abs, tag = 'smem constant byte address 0x4 - core index']
  #allocation1 [shape = 'u32[72,128]{1,0:T(1,128)}', space=vmem, size = 0x9000, scoped, tag = 'internal scratch']
  %s0 = inlined_call_operand.vmem [shape: bf16[32,2,8,128], index: 0, kind: input, shape index: {}]
  %s1 = inlined_call_operand.vmem [shape: f32[1,128], index: 1, kind: input, shape index: {}]
  %s2 = inlined_call_operand.vmem [shape: f32[1,128], index: 2, kind: input, shape index: {}]
  %s3 = inlined_call_operand.vmem [shape: f32[32,4,128], index: 3, kind: output, shape index: {}]
  %s4 = sld [smem:[#allocation0]]
  $region45: #{conv3d_block_forward.3} parent=0
    _
  %s6 = ssub.s32 1, %s4
  %s7 = scalar_select 0, %s6, %s4
  loop: start=0, step=1, limit=6
  $region2: #{conv3d_block_forward.3} parent=0 // loop_pre_header
    _
  $region3: #{conv3d_block_forward.3} parent=0 // loop_header
    %s9 = sphi 0, %s13
    %p10 = scmp.ge.s32.totalorder %s9, 6
    %s19 = sphi 0, %s21
    %s22 = sphi 0, %s19
    %s23 = sphi 0, %s22
    %s39 = sphi 0, %s23
    %s43 = sphi 0, %s43
    %s45 = sphi 0, %s43
    %s46 = sphi 0, %s45
    %s60 = sphi 0, %s46
    %s64 = sphi 0, %s64
    %s66 = sphi 0, %s64
    %s67 = sphi 0, %s66
    %s81 = sphi 0, %s67
    %s87 = sphi 0, %s89
    %s90 = sphi 0, %s87
    %s91 = sphi 0, %s90
    %s107 = sphi 0, %s91
  $region4: #{conv3d_block_forward.3} parent=0 // loop_header_branch
    %12 = sbr.rel (%p10) target = $region8
  $region5: #{conv3d_block_forward.3} parent=0 // loop_body
    %s14 = ssub.s32 %s9, 1
    %s15 = ssub.s32 %s9, 2
    %s16 = sadd.s32 %s9, 1
    %s17 = ssub.s32 %s9, %s16
    %p18 = scmp.eq.s32.totalorder %s17, 0
    %s20 = sadd.s32 %s19, 1
    %s21 = scalar_select %p18, %s19, %s20
    %p24 = pneg %p18
    %p25 = scmp.eq.s32.totalorder %s9, 3
    %p26 = por %p24, %p25
    %p27 = scmp.ne.s32.totalorder %s19, %s22
    %p28 = scmp.eq.s32.totalorder %s9, 0
    %p29 = por %p27, %p28
    %p30 = scmp.ne.s32.totalorder %s19, %s22
    %p31 = scmp.eq.s32.totalorder %s14, 3
    %p32 = por %p30, %p31
    %p33 = scmp.ne.s32.totalorder %s22, %s23
    %p34 = scmp.eq.s32.totalorder %s14, 0
    %p35 = por %p33, %p34
    %p36 = scmp.ne.s32.totalorder %s22, %s23
    %p37 = scmp.eq.s32.totalorder %s15, 3
    %p38 = por %p36, %p37
    %p40 = scmp.ne.s32.totalorder %s23, %s39
    %p41 = scmp.eq.s32.totalorder %s15, 0
    %p42 = por %p40, %p41
    %s44 = sadd.s32 %s43, 1
    %p47 = scmp.eq.s32.totalorder %s9, 3
    %p48 = scmp.ne.s32.totalorder %s43, %s45
    %p49 = scmp.eq.s32.totalorder %s9, 0
    %p50 = por %p48, %p49
    %p51 = scmp.ne.s32.totalorder %s43, %s45
    %p52 = scmp.eq.s32.totalorder %s14, 3
    %p53 = por %p51, %p52
    %p54 = scmp.ne.s32.totalorder %s45, %s46
    %p55 = scmp.eq.s32.totalorder %s14, 0
    %p56 = por %p54, %p55
    %p57 = scmp.ne.s32.totalorder %s45, %s46
    %p58 = scmp.eq.s32.totalorder %s15, 3
    %p59 = por %p57, %p58
    %p61 = scmp.ne.s32.totalorder %s46, %s60
    %p62 = scmp.eq.s32.totalorder %s15, 0
    %p63 = por %p61, %p62
    %s65 = sadd.s32 %s64, 1
    %p68 = scmp.eq.s32.totalorder %s9, 3
    %p69 = scmp.ne.s32.totalorder %s64, %s66
    %p70 = scmp.eq.s32.totalorder %s9, 0
    %p71 = por %p69, %p70
    %p72 = scmp.ne.s32.totalorder %s64, %s66
    %p73 = scmp.eq.s32.totalorder %s14, 3
    %p74 = por %p72, %p73
    %p75 = scmp.ne.s32.totalorder %s66, %s67
    %p76 = scmp.eq.s32.totalorder %s14, 0
    %p77 = por %p75, %p76
    %p78 = scmp.ne.s32.totalorder %s66, %s67
    %p79 = scmp.eq.s32.totalorder %s15, 3
    %p80 = por %p78, %p79
    %p82 = scmp.ne.s32.totalorder %s67, %s81
    %p83 = scmp.eq.s32.totalorder %s15, 0
    %p84 = por %p82, %p83
    %s85 = ssub.s32 %s9, %s16
    %p86 = scmp.eq.s32.totalorder %s85, 0
    %s88 = sadd.s32 %s87, 1
    %s89 = scalar_select %p86, %s87, %s88
    %p92 = pneg %p86
    %p93 = scmp.eq.s32.totalorder %s9, 3
    %p94 = por %p92, %p93
    %p95 = scmp.ne.s32.totalorder %s87, %s90
    %p96 = scmp.eq.s32.totalorder %s9, 0
    %p97 = por %p95, %p96
    %p98 = scmp.ne.s32.totalorder %s87, %s90
    %p99 = scmp.eq.s32.totalorder %s14, 3
    %p100 = por %p98, %p99
    %p101 = scmp.ne.s32.totalorder %s90, %s91
    %p102 = scmp.eq.s32.totalorder %s14, 0
    %p103 = por %p101, %p102
    %p104 = scmp.ne.s32.totalorder %s90, %s91
    %p105 = scmp.eq.s32.totalorder %s15, 3
    %p106 = por %p104, %p105
    %p108 = scmp.ne.s32.totalorder %s91, %s107
    %p109 = scmp.eq.s32.totalorder %s15, 0
    %p110 = por %p108, %p109
    %p111 = scmp.le.s32.totalorder 1, %s9
    %p112 = scmp.lt.s32.totalorder %s9, 5
    %p113 = pnand %p111, %p112
    %p114 = pneg %p113
    // Predicated region
    $region9: #{conv3d_block_forward.3} parent=5 // pred_check
      _
    $region10: #{conv3d_block_forward.3} parent=5 // pred_check_branch
      %116 = sbr.rel (%p113) target = $region12
    $region11: #{conv3d_block_forward.3} parent=5 // pred_region
      %s117 = ssub.s32 %s9, 1
      // Predicated region
      $region13: #{conv3d_block_forward.3} parent=11 // pred_check
        %p118 = pneg %p56
      $region14: #{conv3d_block_forward.3} parent=11 // pred_check_branch
        %120 = sbr.rel (%p118) target = $region16
      $region15: #{conv3d_block_forward.3} parent=11 // pred_region
        _
      $region16: #{conv3d_block_forward.3} parent=11 // pred_fallthru
        _
      // Predicated region
      $region17: #{conv3d_block_forward.3} parent=11 // pred_check
        %p121 = pneg %p77
      $region18: #{conv3d_block_forward.3} parent=11 // pred_check_branch
        %123 = sbr.rel (%p121) target = $region20
      $region19: #{conv3d_block_forward.3} parent=11 // pred_region
        _
      $region20: #{conv3d_block_forward.3} parent=11 // pred_fallthru
        _
    $region12: #{conv3d_block_forward.3} parent=5 // pred_fallthru
      _
    %p124 = scmp.lt.s32.totalorder %s9, 4
    // Predicated region
    $region21: #{conv3d_block_forward.3} parent=5 // pred_check
      %p125 = pneg %p124
    $region22: #{conv3d_block_forward.3} parent=5 // pred_check_branch
      %127 = sbr.rel (%p125) target = $region24
    $region23: #{conv3d_block_forward.3} parent=5 // pred_region
      // Predicated region
      $region25: #{conv3d_block_forward.3} parent=23 // pred_check
        %p128 = pneg %p29
      $region26: #{conv3d_block_forward.3} parent=23 // pred_check_branch
        %130 = sbr.rel (%p128) target = $region28
      $region27: #{conv3d_block_forward.3} parent=23 // pred_region
        %s131 = smul.u32 8, %s9
        %p132 = scmp.lt.s32.totalorder %s131, 31
        %s133 = scalar_select %p132, %s131, 31
        %s134 = smul.addr %s133, 2
        %s135 = smul.addr %s134, 4
        %s136 = scalar_lea.vmem %s0, %s135
        %s137 = smul.u32 8, %s9
      $region28: #{conv3d_block_forward.3} parent=23 // pred_fallthru
        _
    $region24: #{conv3d_block_forward.3} parent=5 // pred_fallthru
      _
    %p138 = scmp.le.s32.totalorder 1, %s9
    %p139 = scmp.lt.s32.totalorder %s9, 5
    %p140 = pnand %p138, %p139
    %p141 = pneg %p140
    // Predicated region
    $region29: #{conv3d_block_forward.3} parent=5 // pred_check
      _
    $region30: #{conv3d_block_forward.3} parent=5 // pred_check_branch
      %143 = sbr.rel (%p140) target = $region32
    $region31: #{conv3d_block_forward.3} parent=5 // pred_region
      %s144 = ssub.s32 %s9, 1
      %s145 = smul.u32 8, %s14
      %p146 = scmp.lt.s32.totalorder %s145, 31
      %s147 = scalar_select %p146, %s145, 31
      %s148 = smul.addr %s147, 2
      %s149 = smul.addr %s148, 4
      %s150 = scalar_lea.vmem %s0, %s149
      %p151 = pneg %p35
      %p152 = pneg %p32
      %p153 = pneg %p56
      %p154 = pneg %p53
      %p155 = pneg %p77
      %p156 = pneg %p74
      %p157 = pneg %p103
      %p158 = pneg %p100
      %s159 = smul.u32 8, %s14
      %p160 = scmp.lt.s32.totalorder %s159, 31
      %s161 = scalar_select %p160, %s159, 31
      %s162 = smul.addr %s161, 4
      %s163 = scalar_lea.vmem %s3, %s162
      %s164 = smul.u32 8, %s14
      %p165 = scmp.lt.s32.totalorder %s164, 31
      %s166 = scalar_select %p165, %s164, 31
      %s167 = smul.addr %s166, 2
      %s168 = smul.addr %s167, 4
      %s169 = scalar_lea.vmem %s0, %s168
      %s170 = smul.u32 8, %s14
      %s171 = smul.u32 8, %s14
      %p172 = scmp.lt.s32.totalorder %s171, 31
      %s173 = scalar_select %p172, %s171, 31
      %s174 = smul.addr %s173, 4
      %s175 = scalar_lea.vmem %s3, %s174
      %s176 = smul.u32 8, %s14
      %v177 = vld [vmem:[%s169] sm:$0xf]
      %v178 = vld [vmem:[%s169 + $0x4] sm:$0xf]
      %v179 = vld [vmem:[%s169 + $0x8] sm:$0xf]
      %v180 = vld [vmem:[%s169 + $0xc] sm:$0xf]
      %v181 = vld [vmem:[%s169 + $0x10] sm:$0xf]
      %v182 = vld [vmem:[%s169 + $0x14] sm:$0xf]
      %v183 = vld [vmem:[%s169 + $0x18] sm:$0xf]
      %v184 = vld [vmem:[%s169 + $0x1c] sm:$0xf]
      %v185 = vld [vmem:[%s169 + $0x20] sm:$0xf]
      %v186 = vld [vmem:[%s169 + $0x24] sm:$0xf]
      %v187 = vld [vmem:[%s169 + $0x28] sm:$0xf]
      %v188 = vld [vmem:[%s169 + $0x2c] sm:$0xf]
      %v189 = vld [vmem:[%s169 + $0x30] sm:$0xf]
      %v190 = vld [vmem:[%s169 + $0x34] sm:$0xf]
      %v191 = vld [vmem:[%s169 + $0x38] sm:$0xf]
      %v192 = vld [vmem:[%s169 + $0x3c] sm:$0xf]
      %v193 = vunpack.c.l.bf16 %v177
      %v194 = vunpack.c.l.bf16 %v178
      %v195 = vunpack.c.l.bf16 %v179
      %v196 = vunpack.c.l.bf16 %v180
      %v197 = vunpack.c.l.bf16 %v181
      %v198 = vunpack.c.l.bf16 %v182
      %v199 = vunpack.c.l.bf16 %v183
      %v200 = vunpack.c.l.bf16 %v184
      %v201 = vunpack.c.l.bf16 %v185
      %v202 = vunpack.c.l.bf16 %v186
      %v203 = vunpack.c.l.bf16 %v187
      %v204 = vunpack.c.l.bf16 %v188
      %v205 = vunpack.c.l.bf16 %v189
      %v206 = vunpack.c.l.bf16 %v190
      %v207 = vunpack.c.l.bf16 %v191
      %v208 = vunpack.c.l.bf16 %v192
      %v209 = vld [vmem:[%s1] sm:$0x1]
      %v211 = vperm.slane %v209, 0
      %v213 = vmul.f32 %v193, %v211
      %v214 = vmul.f32 %v194, %v211
      %v215 = vmul.f32 %v195, %v211
      %v216 = vmul.f32 %v196, %v211
      %v217 = vmul.f32 %v197, %v211
      %v218 = vmul.f32 %v198, %v211
      %v219 = vmul.f32 %v199, %v211
      %v220 = vmul.f32 %v200, %v211
      %v221 = vmul.f32 %v201, %v211
      %v222 = vmul.f32 %v202, %v211
      %v223 = vmul.f32 %v203, %v211
      %v224 = vmul.f32 %v204, %v211
      %v225 = vmul.f32 %v205, %v211
      %v226 = vmul.f32 %v206, %v211
      %v227 = vmul.f32 %v207, %v211
      %v228 = vmul.f32 %v208, %v211
      %v229 = vld [vmem:[%s2] sm:$0x1]
      %v231 = vperm.slane %v229, 0
      %v233 = vadd.f32 %v213, %v231
      %v234 = vadd.f32 %v214, %v231
      %v235 = vadd.f32 %v215, %v231
      %v236 = vadd.f32 %v216, %v231
      %v237 = vadd.f32 %v217, %v231
      %v238 = vadd.f32 %v218, %v231
      %v239 = vadd.f32 %v219, %v231
      %v240 = vadd.f32 %v220, %v231
      %v241 = vadd.f32 %v221, %v231
      %v242 = vadd.f32 %v222, %v231
      %v243 = vadd.f32 %v223, %v231
      %v244 = vadd.f32 %v224, %v231
      %v245 = vadd.f32 %v225, %v231
      %v246 = vadd.f32 %v226, %v231
      %v247 = vadd.f32 %v227, %v231
      %v248 = vadd.f32 %v228, %v231
      %v249 = vmax.f32 %v233, 0.0
      %v250 = vmax.f32 %v234, 0.0
      %v251 = vmax.f32 %v235, 0.0
      %v252 = vmax.f32 %v236, 0.0
      %v253 = vmax.f32 %v237, 0.0
      %v254 = vmax.f32 %v238, 0.0
      %v255 = vmax.f32 %v239, 0.0
      %v256 = vmax.f32 %v240, 0.0
      %v257 = vmax.f32 %v241, 0.0
      %v258 = vmax.f32 %v242, 0.0
      %v259 = vmax.f32 %v243, 0.0
      %v260 = vmax.f32 %v244, 0.0
      %v261 = vmax.f32 %v245, 0.0
      %v262 = vmax.f32 %v246, 0.0
      %v263 = vmax.f32 %v247, 0.0
      %v264 = vmax.f32 %v248, 0.0
      %v265 = vmax.f32 %v249, %v250
      %v266 = vmax.f32 %v251, %v252
      %v267 = vmax.f32 %v253, %v254
      %v268 = vmax.f32 %v255, %v256
      %v269 = vmax.f32 %v257, %v258
      %v270 = vmax.f32 %v259, %v260
      %v271 = vmax.f32 %v261, %v262
      %v272 = vmax.f32 %v263, %v264
      %v281 = vrot.slane %v265, 2
      %v282 = vrot.slane %v265, 4
      %v283 = vrot.slane %v265, 6
      %v284 = vrot.slane %v266, 2
      %v285 = vrot.slane %v266, 4
      %v286 = vrot.slane %v266, 6
      %v287 = vrot.slane %v267, 2
      %v288 = vrot.slane %v267, 4
      %v289 = vrot.slane %v267, 6
      %v290 = vrot.slane %v268, 2
      %v291 = vrot.slane %v268, 4
      %v292 = vrot.slane %v268, 6
      %v293 = vrot.slane %v269, 2
      %v294 = vrot.slane %v269, 4
      %v295 = vrot.slane %v269, 6
      %v296 = vrot.slane %v270, 2
      %v297 = vrot.slane %v270, 4
      %v298 = vrot.slane %v270, 6
      %v299 = vrot.slane %v271, 2
      %v300 = vrot.slane %v271, 4
      %v301 = vrot.slane %v271, 6
      %v302 = vrot.slane %v272, 2
      %v303 = vrot.slane %v272, 4
      %v304 = vrot.slane %v272, 6
      %vm329 = vcmask 1041408
      %v330 = vsel %vm329, %v265, -inf
      %v331 = vrot.slane %v330, 4
      %v332 = vmax.f32 %v330, %v331
      %v333 = vrot.slane %v332, 2
      %v334 = vmax.f32 %v332, %v333
      %v335 = vrot.slane %v334, 1
      %v336 = vmax.f32 %v334, %v335
      %v337 = vsel %vm329, %v281, -inf
      %v338 = vrot.slane %v337, 4
      %v339 = vmax.f32 %v337, %v338
      %v340 = vrot.slane %v339, 2
      %v341 = vmax.f32 %v339, %v340
      %v342 = vrot.slane %v341, 1
      %v343 = vmax.f32 %v341, %v342
      %v344 = vsel %vm329, %v282, -inf
      %v345 = vrot.slane %v344, 4
      %v346 = vmax.f32 %v344, %v345
      %v347 = vrot.slane %v346, 2
      %v348 = vmax.f32 %v346, %v347
      %v349 = vrot.slane %v348, 1
      %v350 = vmax.f32 %v348, %v349
      %v351 = vsel %vm329, %v283, -inf
      %v352 = vrot.slane %v351, 4
      %v353 = vmax.f32 %v351, %v352
      %v354 = vrot.slane %v353, 2
      %v355 = vmax.f32 %v353, %v354
      %v356 = vrot.slane %v355, 1
      %v357 = vmax.f32 %v355, %v356
      %v358 = vsel %vm329, %v266, -inf
      %v359 = vrot.slane %v358, 4
      %v360 = vmax.f32 %v358, %v359
      %v361 = vrot.slane %v360, 2
      %v362 = vmax.f32 %v360, %v361
      %v363 = vrot.slane %v362, 1
      %v364 = vmax.f32 %v362, %v363
      %v365 = vsel %vm329, %v284, -inf
      %v366 = vrot.slane %v365, 4
      %v367 = vmax.f32 %v365, %v366
      %v368 = vrot.slane %v367, 2
      %v369 = vmax.f32 %v367, %v368
      %v370 = vrot.slane %v369, 1
      %v371 = vmax.f32 %v369, %v370
      %v372 = vsel %vm329, %v285, -inf
      %v373 = vrot.slane %v372, 4
      %v374 = vmax.f32 %v372, %v373
      %v375 = vrot.slane %v374, 2
      %v376 = vmax.f32 %v374, %v375
      %v377 = vrot.slane %v376, 1
      %v378 = vmax.f32 %v376, %v377
      %v379 = vsel %vm329, %v286, -inf
      %v380 = vrot.slane %v379, 4
      %v381 = vmax.f32 %v379, %v380
      %v382 = vrot.slane %v381, 2
      %v383 = vmax.f32 %v381, %v382
      %v384 = vrot.slane %v383, 1
      %v385 = vmax.f32 %v383, %v384
      %v386 = vsel %vm329, %v267, -inf
      %v387 = vrot.slane %v386, 4
      %v388 = vmax.f32 %v386, %v387
      %v389 = vrot.slane %v388, 2
      %v390 = vmax.f32 %v388, %v389
      %v391 = vrot.slane %v390, 1
      %v392 = vmax.f32 %v390, %v391
      %v393 = vsel %vm329, %v287, -inf
      %v394 = vrot.slane %v393, 4
      %v395 = vmax.f32 %v393, %v394
      %v396 = vrot.slane %v395, 2
      %v397 = vmax.f32 %v395, %v396
      %v398 = vrot.slane %v397, 1
      %v399 = vmax.f32 %v397, %v398
      %v400 = vsel %vm329, %v288, -inf
      %v401 = vrot.slane %v400, 4
      %v402 = vmax.f32 %v400, %v401
      %v403 = vrot.slane %v402, 2
      %v404 = vmax.f32 %v402, %v403
      %v405 = vrot.slane %v404, 1
      %v406 = vmax.f32 %v404, %v405
      %v407 = vsel %vm329, %v289, -inf
      %v408 = vrot.slane %v407, 4
      %v409 = vmax.f32 %v407, %v408
      %v410 = vrot.slane %v409, 2
      %v411 = vmax.f32 %v409, %v410
      %v412 = vrot.slane %v411, 1
      %v413 = vmax.f32 %v411, %v412
      %v414 = vsel %vm329, %v268, -inf
      %v415 = vrot.slane %v414, 4
      %v416 = vmax.f32 %v414, %v415
      %v417 = vrot.slane %v416, 2
      %v418 = vmax.f32 %v416, %v417
      %v419 = vrot.slane %v418, 1
      %v420 = vmax.f32 %v418, %v419
      %v421 = vsel %vm329, %v290, -inf
      %v422 = vrot.slane %v421, 4
      %v423 = vmax.f32 %v421, %v422
      %v424 = vrot.slane %v423, 2
      %v425 = vmax.f32 %v423, %v424
      %v426 = vrot.slane %v425, 1
      %v427 = vmax.f32 %v425, %v426
      %v428 = vsel %vm329, %v291, -inf
      %v429 = vrot.slane %v428, 4
      %v430 = vmax.f32 %v428, %v429
      %v431 = vrot.slane %v430, 2
      %v432 = vmax.f32 %v430, %v431
      %v433 = vrot.slane %v432, 1
      %v434 = vmax.f32 %v432, %v433
      %v435 = vsel %vm329, %v292, -inf
      %v436 = vrot.slane %v435, 4
      %v437 = vmax.f32 %v435, %v436
      %v438 = vrot.slane %v437, 2
      %v439 = vmax.f32 %v437, %v438
      %v440 = vrot.slane %v439, 1
      %v441 = vmax.f32 %v439, %v440
      %v442 = vsel %vm329, %v269, -inf
      %v443 = vrot.slane %v442, 4
      %v444 = vmax.f32 %v442, %v443
      %v445 = vrot.slane %v444, 2
      %v446 = vmax.f32 %v444, %v445
      %v447 = vrot.slane %v446, 1
      %v448 = vmax.f32 %v446, %v447
      %v449 = vsel %vm329, %v293, -inf
      %v450 = vrot.slane %v449, 4
      %v451 = vmax.f32 %v449, %v450
      %v452 = vrot.slane %v451, 2
      %v453 = vmax.f32 %v451, %v452
      %v454 = vrot.slane %v453, 1
      %v455 = vmax.f32 %v453, %v454
      %v456 = vsel %vm329, %v294, -inf
      %v457 = vrot.slane %v456, 4
      %v458 = vmax.f32 %v456, %v457
      %v459 = vrot.slane %v458, 2
      %v460 = vmax.f32 %v458, %v459
      %v461 = vrot.slane %v460, 1
      %v462 = vmax.f32 %v460, %v461
      %v463 = vsel %vm329, %v295, -inf
      %v464 = vrot.slane %v463, 4
      %v465 = vmax.f32 %v463, %v464
      %v466 = vrot.slane %v465, 2
      %v467 = vmax.f32 %v465, %v466
      %v468 = vrot.slane %v467, 1
      %v469 = vmax.f32 %v467, %v468
      %v470 = vsel %vm329, %v270, -inf
      %v471 = vrot.slane %v470, 4
      %v472 = vmax.f32 %v470, %v471
      %v473 = vrot.slane %v472, 2
      %v474 = vmax.f32 %v472, %v473
      %v475 = vrot.slane %v474, 1
      %v476 = vmax.f32 %v474, %v475
      %v477 = vsel %vm329, %v296, -inf
      %v478 = vrot.slane %v477, 4
      %v479 = vmax.f32 %v477, %v478
      %v480 = vrot.slane %v479, 2
      %v481 = vmax.f32 %v479, %v480
      %v482 = vrot.slane %v481, 1
      %v483 = vmax.f32 %v481, %v482
      %v484 = vsel %vm329, %v297, -inf
      %v485 = vrot.slane %v484, 4
      %v486 = vmax.f32 %v484, %v485
      %v487 = vrot.slane %v486, 2
      %v488 = vmax.f32 %v486, %v487
      %v489 = vrot.slane %v488, 1
      %v490 = vmax.f32 %v488, %v489
      %v491 = vsel %vm329, %v298, -inf
      %v492 = vrot.slane %v491, 4
      %v493 = vmax.f32 %v491, %v492
      %v494 = vrot.slane %v493, 2
      %v495 = vmax.f32 %v493, %v494
      %v496 = vrot.slane %v495, 1
      %v497 = vmax.f32 %v495, %v496
      %v498 = vsel %vm329, %v271, -inf
      %v499 = vrot.slane %v498, 4
      %v500 = vmax.f32 %v498, %v499
      %v501 = vrot.slane %v500, 2
      %v502 = vmax.f32 %v500, %v501
      %v503 = vrot.slane %v502, 1
      %v504 = vmax.f32 %v502, %v503
      %v505 = vsel %vm329, %v299, -inf
      %v506 = vrot.slane %v505, 4
      %v507 = vmax.f32 %v505, %v506
      %v508 = vrot.slane %v507, 2
      %v509 = vmax.f32 %v507, %v508
      %v510 = vrot.slane %v509, 1
      %v511 = vmax.f32 %v509, %v510
      %v512 = vsel %vm329, %v300, -inf
      %v513 = vrot.slane %v512, 4
      %v514 = vmax.f32 %v512, %v513
      %v515 = vrot.slane %v514, 2
      %v516 = vmax.f32 %v514, %v515
      %v517 = vrot.slane %v516, 1
      %v518 = vmax.f32 %v516, %v517
      %v519 = vsel %vm329, %v301, -inf
      %v520 = vrot.slane %v519, 4
      %v521 = vmax.f32 %v519, %v520
      %v522 = vrot.slane %v521, 2
      %v523 = vmax.f32 %v521, %v522
      %v524 = vrot.slane %v523, 1
      %v525 = vmax.f32 %v523, %v524
      %v526 = vsel %vm329, %v272, -inf
      %v527 = vrot.slane %v526, 4
      %v528 = vmax.f32 %v526, %v527
      %v529 = vrot.slane %v528, 2
      %v530 = vmax.f32 %v528, %v529
      %v531 = vrot.slane %v530, 1
      %v532 = vmax.f32 %v530, %v531
      %v533 = vsel %vm329, %v302, -inf
      %v534 = vrot.slane %v533, 4
      %v535 = vmax.f32 %v533, %v534
      %v536 = vrot.slane %v535, 2
      %v537 = vmax.f32 %v535, %v536
      %v538 = vrot.slane %v537, 1
      %v539 = vmax.f32 %v537, %v538
      %v540 = vsel %vm329, %v303, -inf
      %v541 = vrot.slane %v540, 4
      %v542 = vmax.f32 %v540, %v541
      %v543 = vrot.slane %v542, 2
      %v544 = vmax.f32 %v542, %v543
      %v545 = vrot.slane %v544, 1
      %v546 = vmax.f32 %v544, %v545
      %v547 = vsel %vm329, %v304, -inf
      %v548 = vrot.slane %v547, 4
      %v549 = vmax.f32 %v547, %v548
      %v550 = vrot.slane %v549, 2
      %v551 = vmax.f32 %v549, %v550
      %v552 = vrot.slane %v551, 1
      %v553 = vmax.f32 %v551, %v552
      %vm586 = vcmask 1041409
      %v587 = vsel %vm586, %v343, %v336
      %vm588 = vcmask 1042434
      %v589 = vsel %vm588, %v350, %v587
      %vm590 = vcmask 1043459
      %v591 = vsel %vm590, %v357, %v589
      %v592 = vsel %vm586, %v371, %v364
      %v593 = vsel %vm588, %v378, %v592
      %v594 = vsel %vm590, %v385, %v593
      %v595 = vsel %vm586, %v399, %v392
      %v596 = vsel %vm588, %v406, %v595
      %v597 = vsel %vm590, %v413, %v596
      %v598 = vsel %vm586, %v427, %v420
      %v599 = vsel %vm588, %v434, %v598
      %v600 = vsel %vm590, %v441, %v599
      %v601 = vsel %vm586, %v455, %v448
      %v602 = vsel %vm588, %v462, %v601
      %v603 = vsel %vm590, %v469, %v602
      %v604 = vsel %vm586, %v483, %v476
      %v605 = vsel %vm588, %v490, %v604
      %v606 = vsel %vm590, %v497, %v605
      %v607 = vsel %vm586, %v511, %v504
      %v608 = vsel %vm588, %v518, %v607
      %v609 = vsel %vm590, %v525, %v608
      %v610 = vsel %vm586, %v539, %v532
      %v611 = vsel %vm588, %v546, %v610
      %v612 = vsel %vm590, %v553, %v611
      %621 = vst [vmem:[%s175] sm:$0xf] %v591
      %622 = vst [vmem:[%s175 + $0x4] sm:$0xf] %v594
      %623 = vst [vmem:[%s175 + $0x8] sm:$0xf] %v597
      %624 = vst [vmem:[%s175 + $0xc] sm:$0xf] %v600
      %625 = vst [vmem:[%s175 + $0x10] sm:$0xf] %v603
      %626 = vst [vmem:[%s175 + $0x14] sm:$0xf] %v606
      %627 = vst [vmem:[%s175 + $0x18] sm:$0xf] %v609
      %628 = vst [vmem:[%s175 + $0x1c] sm:$0xf] %v612
      %s629 = smul.u32 8, %s14
      %p630 = scmp.lt.s32.totalorder %s629, 31
      %s631 = scalar_select %p630, %s629, 31
      %s632 = smul.addr %s631, 4
      %s633 = scalar_lea.vmem %s3, %s632
      // Predicated region
      $region33: #{conv3d_block_forward.3} parent=31 // pred_check
        %p634 = pneg %p100
      $region34: #{conv3d_block_forward.3} parent=31 // pred_check_branch
        %636 = sbr.rel (%p634) target = $region36
      $region35: #{conv3d_block_forward.3} parent=31 // pred_region
        %s637 = smul.u32 8, %s14
      $region36: #{conv3d_block_forward.3} parent=31 // pred_fallthru
        _
    $region32: #{conv3d_block_forward.3} parent=5 // pred_fallthru
      _
    %p638 = scmp.le.s32.totalorder 2, %s9
    // Predicated region
    $region37: #{conv3d_block_forward.3} parent=5 // pred_check
      %p639 = pneg %p638
    $region38: #{conv3d_block_forward.3} parent=5 // pred_check_branch
      %641 = sbr.rel (%p639) target = $region40
    $region39: #{conv3d_block_forward.3} parent=5 // pred_region
      %s642 = ssub.s32 %s9, 2
      // Predicated region
      $region41: #{conv3d_block_forward.3} parent=39 // pred_check
        %p643 = pneg %p106
      $region42: #{conv3d_block_forward.3} parent=39 // pred_check_branch
        %645 = sbr.rel (%p643) target = $region44
      $region43: #{conv3d_block_forward.3} parent=39 // pred_region
        %s646 = smul.u32 8, %s15
        %p647 = scmp.lt.s32.totalorder %s646, 31
        %s648 = scalar_select %p647, %s646, 31
        %s649 = smul.addr %s648, 4
        %s650 = scalar_lea.vmem %s3, %s649
      $region44: #{conv3d_block_forward.3} parent=39 // pred_fallthru
        _
    $region40: #{conv3d_block_forward.3} parent=5 // pred_fallthru
      _
  $region6: #{conv3d_block_forward.3} parent=0 // loop_footer
    %s13 = sadd.s32 1, %s9
  $region7: #{conv3d_block_forward.3} parent=0 // loop_footer_branch
    %8 = sbr.rel target = $region3
  $region8: #{conv3d_block_forward.3} parent=0 // loop_exit
    _

</llo_original>
